<compile_context>
chip_gen: v7x
topology: tpu7x:2x2x1
jax: 0.10.0
libtpu: 0.0.40
codegen_flags: <defaults>
</compile_context>

<pallas_src>
import functools

import jax
import jax.numpy as jnp
from jax.experimental import pallas as pl
from jax.experimental.pallas import tpu as pltpu


def calculate_required_padding(kernel, strides, in_height, in_width):
    k_height, k_width = kernel
    if k_height % 2 != 1 or k_width % 2 != 1:
        raise KeyError(
            "Only kernels with odd dimension lengths are supported. "
            "received kernel of dimensions {0}".format(kernel)
        )
    stride_height, stride_width = strides
    pad_left = k_width // 2
    pad_top = k_height // 2
    d_right = (in_width - 1) % stride_width
    d_bottom = (in_height - 1) % stride_height
    pad_right = k_width // 2 - d_right
    pad_bottom = k_height // 2 - d_bottom
    return (pad_left, pad_right, pad_top, pad_bottom)


def _toric_pad_kernel(x_ref, o_ref, *, H, W, pads):
    """One (batch, channel-tile) block per grid step.

    x_ref: (1, TC, H, W)     o_ref: (1, TC, H_out, W_out)

    Each output region is written exactly once by a static slice store sourced
    directly from the input ref -- no concatenation, no lane-shifted full-size
    intermediate, minimal vld/vst traffic.
    """
    pad_left, pad_right, pad_top, pad_bottom = pads

    # Trace-time (static) region tables: (dst_start, size, src_start).
    row_regions = []
    if pad_top:
        row_regions.append((0, pad_top, H - pad_top))          # top strip <- bottom of x
    row_regions.append((pad_top, H, 0))                         # body rows
    if pad_bottom:
        row_regions.append((pad_top + H, pad_bottom, 0))        # bottom strip <- top of x

    col_regions = []
    if pad_left:
        col_regions.append((0, pad_left, W - pad_left))         # left strip <- right of x
    col_regions.append((pad_left, W, 0))                        # body cols
    if pad_right:
        col_regions.append((pad_left + W, pad_right, 0))        # right strip <- left of x

    for (r_dst, r_sz, r_src) in row_regions:
        for (c_dst, c_sz, c_src) in col_regions:
            o_ref[0, :, r_dst:r_dst + r_sz, c_dst:c_dst + c_sz] = (
                x_ref[0, :, r_src:r_src + r_sz, c_src:c_src + c_sz]
            )


def _pick_channel_tile(C, H, W, H_out, W_out, itemsize,
                       budget_bytes=12 * 1024 * 1024):
    """Largest divisor of C whose (in + out) tile stays under `budget_bytes`
    (so the double-buffered footprint stays ~<= 2*budget, safe on v5e/v6e/v7x)."""
    per_c = (H * W + H_out * W_out) * itemsize
    tc_max = max(1, budget_bytes // max(per_c, 1))
    tc_max = min(int(tc_max), C)
    for tc in range(tc_max, 0, -1):
        if C % tc == 0:
            return tc
    return 1


def toric_pad(x, kernel, strides):
    """Pallas implementation of the toric_pad module forward pass.

    x: [N, C, H, W] -> [N, C, H + pad_top + pad_bottom, W + pad_left + pad_right]
    """
    if isinstance(kernel, int):
        kernel = (kernel, kernel)
    if isinstance(strides, int):
        strides = (strides, strides)

    N, C, H, W = x.shape
    pad_left, pad_right, pad_top, pad_bottom = calculate_required_padding(
        kernel, strides, H, W
    )
    # Negative required padding -> empty slice in torch.cat (a no-op) -> clamp.
    pad_right = max(pad_right, 0)
    pad_bottom = max(pad_bottom, 0)

    if pad_top > H or pad_bottom > H or pad_left > W or pad_right > W:
        raise ValueError("toric_pad: pad amount exceeds spatial extent")

    H_out = H + pad_top + pad_bottom
    W_out = W + pad_left + pad_right

    itemsize = jnp.dtype(x.dtype).itemsize
    TC = _pick_channel_tile(C, H, W, H_out, W_out, itemsize)
    n_ct = C // TC

    # Explicit VMEM budget: double-buffered (in + out) tile plus headroom,
    # capped at 32 MiB (safe on all generations incl. v7x's 64 MiB physical).
    in_tile_bytes = TC * H * W * itemsize
    out_tile_bytes = TC * H_out * W_out * itemsize
    vmem_limit = min(
        32 * 1024 * 1024,
        max(4 * 1024 * 1024, 2 * (in_tile_bytes + out_tile_bytes) + 2 * 1024 * 1024),
    )

    kern = functools.partial(
        _toric_pad_kernel,
        H=H,
        W=W,
        pads=(pad_left, pad_right, pad_top, pad_bottom),
    )

    return pl.pallas_call(
        kern,
        out_shape=jax.ShapeDtypeStruct((N, C, H_out, W_out), x.dtype),
        grid_spec=pltpu.PrefetchScalarGridSpec(
            num_scalar_prefetch=0,
            grid=(N, n_ct),
            in_specs=[pl.BlockSpec((1, TC, H, W), lambda n, c: (n, c, 0, 0))],
            out_specs=pl.BlockSpec((1, TC, H_out, W_out), lambda n, c: (n, c, 0, 0)),
        ),
        compiler_params=pltpu.CompilerParams(
            dimension_semantics=("parallel", "parallel"),
            vmem_limit_bytes=vmem_limit,
        ),
    )(x)


def toric_pad_reference(x, kernel, strides):
    """Pure-JAX reference mirroring the PyTorch forward exactly."""
    if isinstance(kernel, int):
        kernel = (kernel, kernel)
    if isinstance(strides, int):
        strides = (strides, strides)
    H, W = x.shape[2:]
    pad_left, pad_right, pad_top, pad_bottom = calculate_required_padding(
        kernel, strides, H, W
    )
    if pad_top != 0:
        x = jnp.concatenate([x[:, :, -pad_top:, :], x], axis=2)
    if pad_left != 0:
        x = jnp.concatenate([x[:, :, :, -pad_left:], x], axis=3)
    if pad_bottom > 0:
        x = jnp.concatenate([x, x[:, :, pad_top:pad_top + pad_bottom, :]], axis=2)
    if pad_right > 0:
        x = jnp.concatenate([x, x[:, :, :, pad_left:pad_left + pad_right]], axis=3)
    return x


if __name__ == "__main__":
    key = jax.random.PRNGKey(0)
    N, C, H, W = 2, 4, 16, 16
    x = jax.random.normal(key, (N, C, H, W), dtype=jnp.float32)

    # (kernel, strides) configs: symmetric pad, asymmetric (stride-2), larger kernel.
    for kernel_size, strides in [(3, 1), (3, 2), (5, 1)]:
        out = toric_pad(x, kernel_size, strides)
        out = jax.block_until_ready(out)

        ref = toric_pad_reference(x, kernel_size, strides)
        assert out.shape == ref.shape, (kernel_size, strides, out.shape, ref.shape)
        # Pure copy/gather -> exact equality.
        assert bool(jnp.array_equal(out, ref)), (
            "Pallas toric_pad mismatch vs reference for kernel={}, strides={}".format(
                kernel_size, strides
            )
        )

    print("KERNEL_OK")
</pallas_src>

<mosaic_0001>
module attributes {stable_mosaic.version = 11 : i64} {
  func.func @_toric_pad_kernel(%arg0: i32, %arg1: i32, %arg2: memref<1x4x16x16xf32, #tpu.memory_space<vmem>>, %arg3: memref<1x4x18x18xf32, #tpu.memory_space<vmem>>) attributes {dimension_semantics = [#tpu.dimension_semantics<parallel>, #tpu.dimension_semantics<parallel>], iteration_bounds = array<i64: 2, 1>, scalar_prefetch = 0 : i64, scratch_operands = 0 : i64, tpu.core_type = #tpu.core_type<tc>, window_params = [{transform_indices = @transform_0, window_bounds = array<i64: 1, 4, 16, 16>}, {transform_indices = @transform_1, window_bounds = array<i64: 1, 4, 18, 18>}]} {
    %c0 = arith.constant 0 : index
    %c0_0 = arith.constant 0 : index
    %c15 = arith.constant 15 : index
    %c15_1 = arith.constant 15 : index
    %0 = vector.load %arg2[%c0, %c0_0, %c15, %c15_1] : memref<1x4x16x16xf32, #tpu.memory_space<vmem>>, vector<1x4x1x1xf32>
    %1 = vector.shape_cast %0 : vector<1x4x1x1xf32> to vector<4x1x1xf32>
    %c0_2 = arith.constant 0 : index
    %c0_3 = arith.constant 0 : index
    %c0_4 = arith.constant 0 : index
    %c0_5 = arith.constant 0 : index
    %2 = vector.load %arg3[%c0_2, %c0_3, %c0_4, %c0_5] : memref<1x4x18x18xf32, #tpu.memory_space<vmem>>, vector<1x4x1x1xf32>
    %3 = vector.shape_cast %2 : vector<1x4x1x1xf32> to vector<4x1x1xf32>
    %4 = vector.shape_cast %1 : vector<4x1x1xf32> to vector<1x4x1x1xf32>
    tpu.vector_store %arg3[%c0_2, %c0_3, %c0_4, %c0_5], %4 {strides = array<i32>} : memref<1x4x18x18xf32, #tpu.memory_space<vmem>>, vector<1x4x1x1xf32>,
    %c0_6 = arith.constant 0 : index
    %c0_7 = arith.constant 0 : index
    %c15_8 = arith.constant 15 : index
    %c0_9 = arith.constant 0 : index
    %5 = vector.load %arg2[%c0_6, %c0_7, %c15_8, %c0_9] : memref<1x4x16x16xf32, #tpu.memory_space<vmem>>, vector<1x4x1x16xf32>
    %6 = vector.shape_cast %5 : vector<1x4x1x16xf32> to vector<4x1x16xf32>
    %c0_10 = arith.constant 0 : index
    %c0_11 = arith.constant 0 : index
    %c0_12 = arith.constant 0 : index
    %c1 = arith.constant 1 : index
    %7 = vector.load %arg3[%c0_10, %c0_11, %c0_12, %c1] : memref<1x4x18x18xf32, #tpu.memory_space<vmem>>, vector<1x4x1x16xf32>
    %8 = vector.shape_cast %7 : vector<1x4x1x16xf32> to vector<4x1x16xf32>
    %9 = vector.shape_cast %6 : vector<4x1x16xf32> to vector<1x4x1x16xf32>
    tpu.vector_store %arg3[%c0_10, %c0_11, %c0_12, %c1], %9 {strides = array<i32>} : memref<1x4x18x18xf32, #tpu.memory_space<vmem>>, vector<1x4x1x16xf32>,
    %c0_13 = arith.constant 0 : index
    %c0_14 = arith.constant 0 : index
    %c15_15 = arith.constant 15 : index
    %c0_16 = arith.constant 0 : index
    %10 = vector.load %arg2[%c0_13, %c0_14, %c15_15, %c0_16] : memref<1x4x16x16xf32, #tpu.memory_space<vmem>>, vector<1x4x1x1xf32>
    %11 = vector.shape_cast %10 : vector<1x4x1x1xf32> to vector<4x1x1xf32>
    %c0_17 = arith.constant 0 : index
    %c0_18 = arith.constant 0 : index
    %c0_19 = arith.constant 0 : index
    %c17 = arith.constant 17 : index
    %12 = vector.load %arg3[%c0_17, %c0_18, %c0_19, %c17] : memref<1x4x18x18xf32, #tpu.memory_space<vmem>>, vector<1x4x1x1xf32>
    %13 = vector.shape_cast %12 : vector<1x4x1x1xf32> to vector<4x1x1xf32>
    %14 = vector.shape_cast %11 : vector<4x1x1xf32> to vector<1x4x1x1xf32>
    tpu.vector_store %arg3[%c0_17, %c0_18, %c0_19, %c17], %14 {strides = array<i32>} : memref<1x4x18x18xf32, #tpu.memory_space<vmem>>, vector<1x4x1x1xf32>,
    %c0_20 = arith.constant 0 : index
    %c0_21 = arith.constant 0 : index
    %c0_22 = arith.constant 0 : index
    %c15_23 = arith.constant 15 : index
    %15 = vector.load %arg2[%c0_20, %c0_21, %c0_22, %c15_23] : memref<1x4x16x16xf32, #tpu.memory_space<vmem>>, vector<1x4x16x1xf32>
    %16 = vector.shape_cast %15 : vector<1x4x16x1xf32> to vector<4x16x1xf32>
    %c0_24 = arith.constant 0 : index
    %c0_25 = arith.constant 0 : index
    %c1_26 = arith.constant 1 : index
    %c0_27 = arith.constant 0 : index
    %17 = vector.load %arg3[%c0_24, %c0_25, %c1_26, %c0_27] : memref<1x4x18x18xf32, #tpu.memory_space<vmem>>, vector<1x4x16x1xf32>
    %18 = vector.shape_cast %17 : vector<1x4x16x1xf32> to vector<4x16x1xf32>
    %19 = vector.shape_cast %16 : vector<4x16x1xf32> to vector<1x4x16x1xf32>
    tpu.vector_store %arg3[%c0_24, %c0_25, %c1_26, %c0_27], %19 {strides = array<i32>} : memref<1x4x18x18xf32, #tpu.memory_space<vmem>>, vector<1x4x16x1xf32>,
    %c0_28 = arith.constant 0 : index
    %c0_29 = arith.constant 0 : index
    %c0_30 = arith.constant 0 : index
    %c0_31 = arith.constant 0 : index
    %20 = vector.load %arg2[%c0_28, %c0_29, %c0_30, %c0_31] : memref<1x4x16x16xf32, #tpu.memory_space<vmem>>, vector<1x4x16x16xf32>
    %21 = vector.shape_cast %20 : vector<1x4x16x16xf32> to vector<4x16x16xf32>
    %c0_32 = arith.constant 0 : index
    %c0_33 = arith.constant 0 : index
    %c1_34 = arith.constant 1 : index
    %c1_35 = arith.constant 1 : index
    %22 = vector.load %arg3[%c0_32, %c0_33, %c1_34, %c1_35] : memref<1x4x18x18xf32, #tpu.memory_space<vmem>>, vector<1x4x16x16xf32>
    %23 = vector.shape_cast %22 : vector<1x4x16x16xf32> to vector<4x16x16xf32>
    %24 = vector.shape_cast %21 : vector<4x16x16xf32> to vector<1x4x16x16xf32>
    tpu.vector_store %arg3[%c0_32, %c0_33, %c1_34, %c1_35], %24 {strides = array<i32>} : memref<1x4x18x18xf32, #tpu.memory_space<vmem>>, vector<1x4x16x16xf32>,
    %c0_36 = arith.constant 0 : index
    %c0_37 = arith.constant 0 : index
    %c0_38 = arith.constant 0 : index
    %c0_39 = arith.constant 0 : index
    %25 = vector.load %arg2[%c0_36, %c0_37, %c0_38, %c0_39] : memref<1x4x16x16xf32, #tpu.memory_space<vmem>>, vector<1x4x16x1xf32>
    %26 = vector.shape_cast %25 : vector<1x4x16x1xf32> to vector<4x16x1xf32>
    %c0_40 = arith.constant 0 : index
    %c0_41 = arith.constant 0 : index
    %c1_42 = arith.constant 1 : index
    %c17_43 = arith.constant 17 : index
    %27 = vector.load %arg3[%c0_40, %c0_41, %c1_42, %c17_43] : memref<1x4x18x18xf32, #tpu.memory_space<vmem>>, vector<1x4x16x1xf32>
    %28 = vector.shape_cast %27 : vector<1x4x16x1xf32> to vector<4x16x1xf32>
    %29 = vector.shape_cast %26 : vector<4x16x1xf32> to vector<1x4x16x1xf32>
    tpu.vector_store %arg3[%c0_40, %c0_41, %c1_42, %c17_43], %29 {strides = array<i32>} : memref<1x4x18x18xf32, #tpu.memory_space<vmem>>, vector<1x4x16x1xf32>,
    %c0_44 = arith.constant 0 : index
    %c0_45 = arith.constant 0 : index
    %c0_46 = arith.constant 0 : index
    %c15_47 = arith.constant 15 : index
    %30 = vector.load %arg2[%c0_44, %c0_45, %c0_46, %c15_47] : memref<1x4x16x16xf32, #tpu.memory_space<vmem>>, vector<1x4x1x1xf32>
    %31 = vector.shape_cast %30 : vector<1x4x1x1xf32> to vector<4x1x1xf32>
    %c0_48 = arith.constant 0 : index
    %c0_49 = arith.constant 0 : index
    %c17_50 = arith.constant 17 : index
    %c0_51 = arith.constant 0 : index
    %32 = vector.load %arg3[%c0_48, %c0_49, %c17_50, %c0_51] : memref<1x4x18x18xf32, #tpu.memory_space<vmem>>, vector<1x4x1x1xf32>
    %33 = vector.shape_cast %32 : vector<1x4x1x1xf32> to vector<4x1x1xf32>
    %34 = vector.shape_cast %31 : vector<4x1x1xf32> to vector<1x4x1x1xf32>
    tpu.vector_store %arg3[%c0_48, %c0_49, %c17_50, %c0_51], %34 {strides = array<i32>} : memref<1x4x18x18xf32, #tpu.memory_space<vmem>>, vector<1x4x1x1xf32>,
    %c0_52 = arith.constant 0 : index
    %c0_53 = arith.constant 0 : index
    %c0_54 = arith.constant 0 : index
    %c0_55 = arith.constant 0 : index
    %35 = vector.load %arg2[%c0_52, %c0_53, %c0_54, %c0_55] : memref<1x4x16x16xf32, #tpu.memory_space<vmem>>, vector<1x4x1x16xf32>
    %36 = vector.shape_cast %35 : vector<1x4x1x16xf32> to vector<4x1x16xf32>
    %c0_56 = arith.constant 0 : index
    %c0_57 = arith.constant 0 : index
    %c17_58 = arith.constant 17 : index
    %c1_59 = arith.constant 1 : index
    %37 = vector.load %arg3[%c0_56, %c0_57, %c17_58, %c1_59] : memref<1x4x18x18xf32, #tpu.memory_space<vmem>>, vector<1x4x1x16xf32>
    %38 = vector.shape_cast %37 : vector<1x4x1x16xf32> to vector<4x1x16xf32>
    %39 = vector.shape_cast %36 : vector<4x1x16xf32> to vector<1x4x1x16xf32>
    tpu.vector_store %arg3[%c0_56, %c0_57, %c17_58, %c1_59], %39 {strides = array<i32>} : memref<1x4x18x18xf32, #tpu.memory_space<vmem>>, vector<1x4x1x16xf32>,
    %c0_60 = arith.constant 0 : index
    %c0_61 = arith.constant 0 : index
    %c0_62 = arith.constant 0 : index
    %c0_63 = arith.constant 0 : index
    %40 = vector.load %arg2[%c0_60, %c0_61, %c0_62, %c0_63] : memref<1x4x16x16xf32, #tpu.memory_space<vmem>>, vector<1x4x1x1xf32>
    %41 = vector.shape_cast %40 : vector<1x4x1x1xf32> to vector<4x1x1xf32>
    %c0_64 = arith.constant 0 : index
    %c0_65 = arith.constant 0 : index
    %c17_66 = arith.constant 17 : index
    %c17_67 = arith.constant 17 : index
    %42 = vector.load %arg3[%c0_64, %c0_65, %c17_66, %c17_67] : memref<1x4x18x18xf32, #tpu.memory_space<vmem>>, vector<1x4x1x1xf32>
    %43 = vector.shape_cast %42 : vector<1x4x1x1xf32> to vector<4x1x1xf32>
    %44 = vector.shape_cast %41 : vector<4x1x1xf32> to vector<1x4x1x1xf32>
    tpu.vector_store %arg3[%c0_64, %c0_65, %c17_66, %c17_67], %44 {strides = array<i32>} : memref<1x4x18x18xf32, #tpu.memory_space<vmem>>, vector<1x4x1x1xf32>,
    return
  }
  func.func @transform_0(%arg0: i32, %arg1: i32) -> (i32, i32, i32, i32) {
    %c0_i32 = arith.constant 0 : i32
    %c0_i32_0 = arith.constant 0 : i32
    %c0_i32_1 = arith.constant 0 : i32
    return %arg0, %arg1, %c0_i32, %c0_i32_0 : i32, i32, i32, i32
  }
  func.func @transform_1(%arg0: i32, %arg1: i32) -> (i32, i32, i32, i32) {
    %c0_i32 = arith.constant 0 : i32
    %c0_i32_0 = arith.constant 0 : i32
    %c0_i32_1 = arith.constant 0 : i32
    return %arg0, %arg1, %c0_i32, %c0_i32_0 : i32, i32, i32, i32
  }
}

</mosaic_0001>

<llo_original>
// kernel: tpu_custom_call.1
$region0: #{tpu_custom_call.1}
  #allocation0 [shape = 'u32[]', space=smem, size = 0x4, offset = 0x4, fixed_abs, tag = 'smem constant byte address 0x4 - core index']
  #allocation1 [shape = 'u32[144,128]{1,0:T(1,128)}', space=vmem, size = 0x12000, scoped, tag = 'internal scratch']
  %s0 = inlined_call_operand.hbm [shape: f32[2,4,16,16], index: 0, kind: input, shape index: {}]
  %s1 = inlined_call_operand.vmem [shape: f32[2,4,18,18], index: 1, kind: output, shape index: {}]
  %s2 = sld [smem:[#allocation0]]
  $region41: #{tpu_custom_call.1} parent=0
    _
  %s4 = ssub.s32 1, %s2
  %s5 = scalar_select 0, %s4, %s2
  $region1: #{tpu_custom_call.1} parent=0
    #allocation2 [shape = 'u8[65536]{0}', space=vmem, size = 0x10000, scoped, tag = 'input window, operand 0']
    #allocation3 [shape = 's32[2]{0}', space=sflag, size = 0x8, scoped, tag = 'scoped memory for tpu_custom_call.1']
    %6 = vsyncpa [#allocation3], 0
    %s7 = scalar_lea.sflag [#allocation3], 1
    %8 = vsyncpa %s7, 0
    loop: start=0, step=1, limit=4
    $region2: #{tpu_custom_call.1} parent=1 // loop_pre_header
      _
    $region3: #{tpu_custom_call.1} parent=1 // loop_header
      %s10 = sphi 0, %s14
      %p11 = scmp.ge.s32.totalorder %s10, 4
      %s17 = sphi 0, %s29
      %s18 = sphi 0, %s25
      %s19 = sphi 0, %s17
      %s20 = sphi 0, %s18
      %s21 = sphi 0, %s19
      %s22 = sphi 0, %s20
      %s34 = sphi 0, %s36
      %s37 = sphi 0, %s34
      %s38 = sphi 0, %s37
      %s54 = sphi 0, %s38
      %s62 = sphi 0, %s64
      %s65 = sphi 0, %s62
      %s66 = sphi 0, %s65
      %s82 = sphi 0, %s66
    $region4: #{tpu_custom_call.1} parent=1 // loop_header_branch
      %13 = sbr.rel (%p11) target = $region8
    $region5: #{tpu_custom_call.1} parent=1 // loop_body
      %s15 = ssub.s32 %s10, 1
      %s16 = ssub.s32 %s10, 2
      %s23 = sadd.s32 1, %s18
      %p24 = scmp.ge.s32.totalorder %s23, 1
      %s25 = scalar_select %p24, 0, %s23
      %s26 = sadd.s32 1, %s17
      %s27 = scalar_select %p24, %s26, %s17
      %p28 = scmp.ge.s32.totalorder %s27, 2
      %s29 = scalar_select %p28, 0, %s27
      %s30 = ssub.s32 %s17, %s29
      %s31 = ssub.s32 %s18, %s25
      %s32 = sor.u32 %s30, %s31
      %p33 = scmp.eq.s32.totalorder %s32, 0
      %s35 = sadd.s32 %s34, 1
      %s36 = scalar_select %p33, %s34, %s35
      %p39 = pneg %p33
      %p40 = scmp.eq.s32.totalorder %s10, 1
      %p41 = por %p39, %p40
      %p42 = scmp.ne.s32.totalorder %s34, %s37
      %p43 = scmp.eq.s32.totalorder %s10, 0
      %p44 = por %p42, %p43
      %p45 = scmp.ne.s32.totalorder %s34, %s37
      %p46 = scmp.eq.s32.totalorder %s15, 1
      %p47 = por %p45, %p46
      %p48 = scmp.ne.s32.totalorder %s37, %s38
      %p49 = scmp.eq.s32.totalorder %s15, 0
      %p50 = por %p48, %p49
      %p51 = scmp.ne.s32.totalorder %s37, %s38
      %p52 = scmp.eq.s32.totalorder %s16, 1
      %p53 = por %p51, %p52
      %p55 = scmp.ne.s32.totalorder %s38, %s54
      %p56 = scmp.eq.s32.totalorder %s16, 0
      %p57 = por %p55, %p56
      %s58 = ssub.s32 %s17, %s29
      %s59 = ssub.s32 %s18, %s25
      %s60 = sor.u32 %s58, %s59
      %p61 = scmp.eq.s32.totalorder %s60, 0
      %s63 = sadd.s32 %s62, 1
      %s64 = scalar_select %p61, %s62, %s63
      %p67 = pneg %p61
      %p68 = scmp.eq.s32.totalorder %s10, 1
      %p69 = por %p67, %p68
      %p70 = scmp.ne.s32.totalorder %s62, %s65
      %p71 = scmp.eq.s32.totalorder %s10, 0
      %p72 = por %p70, %p71
      %p73 = scmp.ne.s32.totalorder %s62, %s65
      %p74 = scmp.eq.s32.totalorder %s15, 1
      %p75 = por %p73, %p74
      %p76 = scmp.ne.s32.totalorder %s65, %s66
      %p77 = scmp.eq.s32.totalorder %s15, 0
      %p78 = por %p76, %p77
      %p79 = scmp.ne.s32.totalorder %s65, %s66
      %p80 = scmp.eq.s32.totalorder %s16, 1
      %p81 = por %p79, %p80
      %p83 = scmp.ne.s32.totalorder %s66, %s82
      %p84 = scmp.eq.s32.totalorder %s16, 0
      %p85 = por %p83, %p84
      %p86 = scmp.le.s32.totalorder 1, %s10
      %p87 = scmp.lt.s32.totalorder %s10, 3
      %p88 = pnand %p86, %p87
      %p89 = pneg %p88
      // Predicated region
      $region9: #{tpu_custom_call.1} parent=5 // pred_check
        _
      $region10: #{tpu_custom_call.1} parent=5 // pred_check_branch
        %91 = sbr.rel (%p88) target = $region12
      $region11: #{tpu_custom_call.1} parent=5 // pred_region
        %s92 = ssub.s32 %s10, 1
      $region12: #{tpu_custom_call.1} parent=5 // pred_fallthru
        _
      %p93 = scmp.lt.s32.totalorder %s10, 2
      // Predicated region
      $region13: #{tpu_custom_call.1} parent=5 // pred_check
        %p94 = pneg %p93
      $region14: #{tpu_custom_call.1} parent=5 // pred_check_branch
        %96 = sbr.rel (%p94) target = $region16
      $region15: #{tpu_custom_call.1} parent=5 // pred_region
        // Predicated region
        $region17: #{tpu_custom_call.1} parent=15 // pred_check
          %p97 = pneg %p44
        $region18: #{tpu_custom_call.1} parent=15 // pred_check_branch
          %99 = sbr.rel (%p97) target = $region20
        $region19: #{tpu_custom_call.1} parent=15 // pred_region
          %s100 = sand.u32 %s34, 1
          %s101 = scalar_lea.sflag [#allocation3], %s100
          %s102 = sand.u32 %s34, 1
          %s103 = smul.addr %s102, 64
          %s104 = scalar_lea.vmem [#allocation2], %s103
          %s105 = smul.u32 4, %s18
          %s107 = ssub.s32 1024, 1024
          %108 = vsyncadd %s101, %s107
          %s109 = smul.addr %s105, 2
          %s110 = smul.addr %s17, 8
          %s111 = sadd.s32 %s109, %s110
          %s112 = smul.addr %s111, 128
          %s113 = scalar_lea.hbm %s0, %s112
          %s114 = sshll.u32 %s104, 4
          %s115 = int_to_ptr.vmem [resolvable:$true] %s114
          %120 = dma.hbm_to_vmem [thread:$0]  %s113, 1024, %s115, %s101, 128, 128, 8
        $region20: #{tpu_custom_call.1} parent=15 // pred_fallthru
          _
      $region16: #{tpu_custom_call.1} parent=5 // pred_fallthru
        _
      %p121 = scmp.le.s32.totalorder 1, %s10
      %p122 = scmp.lt.s32.totalorder %s10, 3
      %p123 = pnand %p121, %p122
      %p124 = pneg %p123
      // Predicated region
      $region21: #{tpu_custom_call.1} parent=5 // pred_check
        _
      $region22: #{tpu_custom_call.1} parent=5 // pred_check_branch
        %126 = sbr.rel (%p123) target = $region24
      $region23: #{tpu_custom_call.1} parent=5 // pred_region
        %s127 = ssub.s32 %s10, 1
        %s128 = sand.u32 %s37, 1
        %s129 = scalar_lea.sflag [#allocation3], %s128
        %s130 = sand.u32 %s37, 1
        %s131 = smul.addr %s130, 64
        %s132 = scalar_lea.vmem [#allocation2], %s131
        // Predicated region
        $region25: #{tpu_custom_call.1} parent=23 // pred_check
          %p133 = pneg %p50
        $region26: #{tpu_custom_call.1} parent=23 // pred_check_branch
          %135 = sbr.rel (%p133) target = $region28
        $region27: #{tpu_custom_call.1} parent=23 // pred_region
          %136 = dma.done %s129, 1024
        $region28: #{tpu_custom_call.1} parent=23 // pred_fallthru
          _
        %s137 = sand.u32 %s37, 1
        %s138 = scalar_lea.sflag [#allocation3], %s137
        %s139 = sand.u32 %s37, 1
        %s140 = smul.addr %s139, 64
        %s141 = scalar_lea.vmem [#allocation2], %s140
        %p142 = pneg %p50
        %p143 = pneg %p47
        %p144 = pneg %p78
        %p145 = pneg %p75
        %s146 = smul.u32 4, %s20
        %p147 = scmp.lt.s32.totalorder %s19, 1
        %s148 = scalar_select %p147, %s19, 1
        %p149 = scmp.lt.s32.totalorder %s146, 3
        %s150 = scalar_select %p149, %s146, 3
        %s151 = smul.addr %s150, 3
        %s152 = smul.addr %s148, 12
        %s153 = sadd.s32 %s151, %s152
        %s154 = smul.addr %s153, 8
        %s155 = scalar_lea.vmem %s1, %s154
        %s156 = smul.u32 4, %s20
        %s157 = smul.u32 4, %s20
        %p158 = scmp.lt.s32.totalorder %s19, 1
        %s159 = scalar_select %p158, %s19, 1
        %p160 = scmp.lt.s32.totalorder %s157, 3
        %s161 = scalar_select %p160, %s157, 3
        %s162 = smul.addr %s161, 3
        %s163 = smul.addr %s159, 12
        %s164 = sadd.s32 %s162, %s163
        %s165 = smul.addr %s164, 8
        %s166 = scalar_lea.vmem %s1, %s165
        %s167 = smul.u32 4, %s20
        %v168 = vld [vmem:[%s132 + $0xf] sm:$0x1]
        %v169 = vld [vmem:[%s132 + $0x1f] sm:$0x1]
        %v170 = vld [vmem:[%s132 + $0x2f] sm:$0x1]
        %v171 = vld [vmem:[%s132 + $0x3f] sm:$0x1]
        %176 = vrot.lane.b32.xlu0 %v168, 113
        %v177 = vpop.permute.xlu0 %176
        %178 = vrot.lane.b32.xlu0 %v169, 113
        %v179 = vpop.permute.xlu0 %178
        %180 = vrot.lane.b32.xlu0 %v170, 113
        %v181 = vpop.permute.xlu0 %180
        %182 = vrot.lane.b32.xlu0 %v171, 113
        %v183 = vpop.permute.xlu0 %182
        %vm188 = vcmask 0
        %189 = vst.msk [vmem:[%s166] sm:$0x1] %vm188, %v177
        %190 = vst.msk [vmem:[%s166 + $0x18] sm:$0x1] %vm188, %v179
        %191 = vst.msk [vmem:[%s166 + $0x30] sm:$0x1] %vm188, %v181
        %192 = vst.msk [vmem:[%s166 + $0x48] sm:$0x1] %vm188, %v183
        %v193 = vld [vmem:[%s132 + $0xf] sm:$0x1]
        %v194 = vld [vmem:[%s132 + $0x1f] sm:$0x1]
        %v195 = vld [vmem:[%s132 + $0x2f] sm:$0x1]
        %v196 = vld [vmem:[%s132 + $0x3f] sm:$0x1]
        %201 = vrot.lane.b32.xlu0 %v193, 1
        %v202 = vpop.permute.xlu0 %201
        %203 = vrot.lane.b32.xlu0 %v194, 1
        %v204 = vpop.permute.xlu0 %203
        %205 = vrot.lane.b32.xlu0 %v195, 1
        %v206 = vpop.permute.xlu0 %205
        %207 = vrot.lane.b32.xlu0 %v196, 1
        %v208 = vpop.permute.xlu0 %207
        %vm213 = vcmask 131080
        %214 = vst.msk [vmem:[%s166] sm:$0x1] %vm213, %v202
        %215 = vst.msk [vmem:[%s166 + $0x18] sm:$0x1] %vm213, %v204
        %216 = vst.msk [vmem:[%s166 + $0x30] sm:$0x1] %vm213, %v206
        %217 = vst.msk [vmem:[%s166 + $0x48] sm:$0x1] %vm213, %v208
        %v218 = vld [vmem:[%s132 + $0xf] sm:$0x1]
        %v219 = vld [vmem:[%s132 + $0x1f] sm:$0x1]
        %v220 = vld [vmem:[%s132 + $0x2f] sm:$0x1]
        %v221 = vld [vmem:[%s132 + $0x3f] sm:$0x1]
        %226 = vrot.lane.b32.xlu0 %v218, 17
        %v227 = vpop.permute.xlu0 %226
        %228 = vrot.lane.b32.xlu0 %v219, 17
        %v229 = vpop.permute.xlu0 %228
        %230 = vrot.lane.b32.xlu0 %v220, 17
        %v231 = vpop.permute.xlu0 %230
        %232 = vrot.lane.b32.xlu0 %v221, 17
        %v233 = vpop.permute.xlu0 %232
        %vm238 = vcmask 139400
        %239 = vst.msk [vmem:[%s166] sm:$0x1] %vm238, %v227
        %240 = vst.msk [vmem:[%s166 + $0x18] sm:$0x1] %vm238, %v229
        %241 = vst.msk [vmem:[%s166 + $0x30] sm:$0x1] %vm238, %v231
        %242 = vst.msk [vmem:[%s166 + $0x48] sm:$0x1] %vm238, %v233
        %v243 = vld [vmem:[%s132] sm:$0xff]
        %v244 = vld [vmem:[%s132 + $0x8] sm:$0xff]
        %v245 = vld [vmem:[%s132 + $0x10] sm:$0xff]
        %v246 = vld [vmem:[%s132 + $0x18] sm:$0xff]
        %v247 = vld [vmem:[%s132 + $0x20] sm:$0xff]
        %v248 = vld [vmem:[%s132 + $0x28] sm:$0xff]
        %v249 = vld [vmem:[%s132 + $0x30] sm:$0xff]
        %v250 = vld [vmem:[%s132 + $0x38] sm:$0xff]
        %259 = vrot.lane.b32.xlu0 %v243, 113
        %v260 = vpop.permute.xlu0 %259
        %261 = vrot.lane.b32.xlu0 %v244, 113
        %v262 = vpop.permute.xlu0 %261
        %263 = vrot.lane.b32.xlu0 %v245, 113
        %v264 = vpop.permute.xlu0 %263
        %265 = vrot.lane.b32.xlu0 %v246, 113
        %v266 = vpop.permute.xlu0 %265
        %267 = vrot.lane.b32.xlu0 %v247, 113
        %v268 = vpop.permute.xlu0 %267
        %269 = vrot.lane.b32.xlu0 %v248, 113
        %v270 = vpop.permute.xlu0 %269
        %271 = vrot.lane.b32.xlu0 %v249, 113
        %v272 = vpop.permute.xlu0 %271
        %273 = vrot.lane.b32.xlu0 %v250, 113
        %v274 = vpop.permute.xlu0 %273
        %vm283 = vcmask 7168
        %284 = vst.msk [vmem:[%s166 + $0x1] sm:$0xff] %vm283, %v260
        %285 = vst.msk [vmem:[%s166 + $0x9] sm:$0xff] %vm283, %v262
        %286 = vst.msk [vmem:[%s166 + $0x19] sm:$0xff] %vm283, %v264
        %287 = vst.msk [vmem:[%s166 + $0x21] sm:$0xff] %vm283, %v266
        %288 = vst.msk [vmem:[%s166 + $0x31] sm:$0xff] %vm283, %v268
        %289 = vst.msk [vmem:[%s166 + $0x39] sm:$0xff] %vm283, %v270
        %290 = vst.msk [vmem:[%s166 + $0x49] sm:$0xff] %vm283, %v272
        %291 = vst.msk [vmem:[%s166 + $0x51] sm:$0xff] %vm283, %v274
        %v292 = vld [vmem:[%s132] sm:$0xff]
        %v293 = vld [vmem:[%s132 + $0x8] sm:$0xff]
        %v294 = vld [vmem:[%s132 + $0x10] sm:$0xff]
        %v295 = vld [vmem:[%s132 + $0x18] sm:$0xff]
        %v296 = vld [vmem:[%s132 + $0x20] sm:$0xff]
        %v297 = vld [vmem:[%s132 + $0x28] sm:$0xff]
        %v298 = vld [vmem:[%s132 + $0x30] sm:$0xff]
        %v299 = vld [vmem:[%s132 + $0x38] sm:$0xff]
        %308 = vrot.lane.b32.xlu0 %v292, 1
        %v309 = vpop.permute.xlu0 %308
        %310 = vrot.lane.b32.xlu0 %v293, 1
        %v311 = vpop.permute.xlu0 %310
        %312 = vrot.lane.b32.xlu0 %v294, 1
        %v313 = vpop.permute.xlu0 %312
        %314 = vrot.lane.b32.xlu0 %v295, 1
        %v315 = vpop.permute.xlu0 %314
        %316 = vrot.lane.b32.xlu0 %v296, 1
        %v317 = vpop.permute.xlu0 %316
        %318 = vrot.lane.b32.xlu0 %v297, 1
        %v319 = vpop.permute.xlu0 %318
        %320 = vrot.lane.b32.xlu0 %v298, 1
        %v321 = vpop.permute.xlu0 %320
        %322 = vrot.lane.b32.xlu0 %v299, 1
        %v323 = vpop.permute.xlu0 %322
        %vm332 = vcmask 138248
        %333 = vst.msk [vmem:[%s166 + $0x1] sm:$0xff] %vm332, %v309
        %334 = vst.msk [vmem:[%s166 + $0x9] sm:$0xff] %vm332, %v311
        %335 = vst.msk [vmem:[%s166 + $0x19] sm:$0xff] %vm332, %v313
        %336 = vst.msk [vmem:[%s166 + $0x21] sm:$0xff] %vm332, %v315
        %337 = vst.msk [vmem:[%s166 + $0x31] sm:$0xff] %vm332, %v317
        %338 = vst.msk [vmem:[%s166 + $0x39] sm:$0xff] %vm332, %v319
        %339 = vst.msk [vmem:[%s166 + $0x49] sm:$0xff] %vm332, %v321
        %340 = vst.msk [vmem:[%s166 + $0x51] sm:$0xff] %vm332, %v323
        %v341 = vld [vmem:[%s132] sm:$0xff]
        %v342 = vld [vmem:[%s132 + $0x8] sm:$0xff]
        %v343 = vld [vmem:[%s132 + $0x10] sm:$0xff]
        %v344 = vld [vmem:[%s132 + $0x18] sm:$0xff]
        %v345 = vld [vmem:[%s132 + $0x20] sm:$0xff]
        %v346 = vld [vmem:[%s132 + $0x28] sm:$0xff]
        %v347 = vld [vmem:[%s132 + $0x30] sm:$0xff]
        %v348 = vld [vmem:[%s132 + $0x38] sm:$0xff]
        %357 = vrot.lane.b32.xlu0 %v341, 17
        %v358 = vpop.permute.xlu0 %357
        %359 = vrot.lane.b32.xlu0 %v342, 17
        %v360 = vpop.permute.xlu0 %359
        %361 = vrot.lane.b32.xlu0 %v343, 17
        %v362 = vpop.permute.xlu0 %361
        %363 = vrot.lane.b32.xlu0 %v344, 17
        %v364 = vpop.permute.xlu0 %363
        %365 = vrot.lane.b32.xlu0 %v345, 17
        %v366 = vpop.permute.xlu0 %365
        %367 = vrot.lane.b32.xlu0 %v346, 17
        %v368 = vpop.permute.xlu0 %367
        %369 = vrot.lane.b32.xlu0 %v347, 17
        %v370 = vpop.permute.xlu0 %369
        %371 = vrot.lane.b32.xlu0 %v348, 17
        %v372 = vpop.permute.xlu0 %371
        %vm381 = vcmask 146568
        %382 = vst.msk [vmem:[%s166 + $0x1] sm:$0xff] %vm381, %v358
        %383 = vst.msk [vmem:[%s166 + $0x9] sm:$0xff] %vm381, %v360
        %384 = vst.msk [vmem:[%s166 + $0x19] sm:$0xff] %vm381, %v362
        %385 = vst.msk [vmem:[%s166 + $0x21] sm:$0xff] %vm381, %v364
        %386 = vst.msk [vmem:[%s166 + $0x31] sm:$0xff] %vm381, %v366
        %387 = vst.msk [vmem:[%s166 + $0x39] sm:$0xff] %vm381, %v368
        %388 = vst.msk [vmem:[%s166 + $0x49] sm:$0xff] %vm381, %v370
        %389 = vst.msk [vmem:[%s166 + $0x51] sm:$0xff] %vm381, %v372
        %v390 = vld [vmem:[%s132] sm:$0x1]
        %v391 = vld [vmem:[%s132 + $0x10] sm:$0x1]
        %v392 = vld [vmem:[%s132 + $0x20] sm:$0x1]
        %v393 = vld [vmem:[%s132 + $0x30] sm:$0x1]
        %398 = vrot.lane.b32.xlu0 %v390, 113
        %v399 = vpop.permute.xlu0 %398
        %400 = vrot.lane.b32.xlu0 %v391, 113
        %v401 = vpop.permute.xlu0 %400
        %402 = vrot.lane.b32.xlu0 %v392, 113
        %v403 = vpop.permute.xlu0 %402
        %404 = vrot.lane.b32.xlu0 %v393, 113
        %v405 = vpop.permute.xlu0 %404
        %410 = vst.msk [vmem:[%s166 + $0x11] sm:$0x1] %vm188, %v399
        %411 = vst.msk [vmem:[%s166 + $0x29] sm:$0x1] %vm188, %v401
        %412 = vst.msk [vmem:[%s166 + $0x41] sm:$0x1] %vm188, %v403
        %413 = vst.msk [vmem:[%s166 + $0x59] sm:$0x1] %vm188, %v405
        %v414 = vld [vmem:[%s132] sm:$0x1]
        %v415 = vld [vmem:[%s132 + $0x10] sm:$0x1]
        %v416 = vld [vmem:[%s132 + $0x20] sm:$0x1]
        %v417 = vld [vmem:[%s132 + $0x30] sm:$0x1]
        %422 = vrot.lane.b32.xlu0 %v414, 1
        %v423 = vpop.permute.xlu0 %422
        %424 = vrot.lane.b32.xlu0 %v415, 1
        %v425 = vpop.permute.xlu0 %424
        %426 = vrot.lane.b32.xlu0 %v416, 1
        %v427 = vpop.permute.xlu0 %426
        %428 = vrot.lane.b32.xlu0 %v417, 1
        %v429 = vpop.permute.xlu0 %428
        %434 = vst.msk [vmem:[%s166 + $0x11] sm:$0x1] %vm213, %v423
        %435 = vst.msk [vmem:[%s166 + $0x29] sm:$0x1] %vm213, %v425
        %436 = vst.msk [vmem:[%s166 + $0x41] sm:$0x1] %vm213, %v427
        %437 = vst.msk [vmem:[%s166 + $0x59] sm:$0x1] %vm213, %v429
        %v438 = vld [vmem:[%s132] sm:$0x1]
        %v439 = vld [vmem:[%s132 + $0x10] sm:$0x1]
        %v440 = vld [vmem:[%s132 + $0x20] sm:$0x1]
        %v441 = vld [vmem:[%s132 + $0x30] sm:$0x1]
        %446 = vrot.lane.b32.xlu0 %v438, 17
        %v447 = vpop.permute.xlu0 %446
        %448 = vrot.lane.b32.xlu0 %v439, 17
        %v449 = vpop.permute.xlu0 %448
        %450 = vrot.lane.b32.xlu0 %v440, 17
        %v451 = vpop.permute.xlu0 %450
        %452 = vrot.lane.b32.xlu0 %v441, 17
        %v453 = vpop.permute.xlu0 %452
        %458 = vst.msk [vmem:[%s166 + $0x11] sm:$0x1] %vm238, %v447
        %459 = vst.msk [vmem:[%s166 + $0x29] sm:$0x1] %vm238, %v449
        %460 = vst.msk [vmem:[%s166 + $0x41] sm:$0x1] %vm238, %v451
        %461 = vst.msk [vmem:[%s166 + $0x59] sm:$0x1] %vm238, %v453
        %s462 = smul.u32 4, %s20
        %p463 = scmp.lt.s32.totalorder %s19, 1
        %s464 = scalar_select %p463, %s19, 1
        %p465 = scmp.lt.s32.totalorder %s462, 3
        %s466 = scalar_select %p465, %s462, 3
        %s467 = smul.addr %s466, 3
        %s468 = smul.addr %s464, 12
        %s469 = sadd.s32 %s467, %s468
        %s470 = smul.addr %s469, 8
        %s471 = scalar_lea.vmem %s1, %s470
        // Predicated region
        $region29: #{tpu_custom_call.1} parent=23 // pred_check
          %p472 = pneg %p75
        $region30: #{tpu_custom_call.1} parent=23 // pred_check_branch
          %474 = sbr.rel (%p472) target = $region32
        $region31: #{tpu_custom_call.1} parent=23 // pred_region
          %s475 = smul.u32 4, %s20
        $region32: #{tpu_custom_call.1} parent=23 // pred_fallthru
          _
      $region24: #{tpu_custom_call.1} parent=5 // pred_fallthru
        _
      %p476 = scmp.le.s32.totalorder 2, %s10
      // Predicated region
      $region33: #{tpu_custom_call.1} parent=5 // pred_check
        %p477 = pneg %p476
      $region34: #{tpu_custom_call.1} parent=5 // pred_check_branch
        %479 = sbr.rel (%p477) target = $region36
      $region35: #{tpu_custom_call.1} parent=5 // pred_region
        %s480 = ssub.s32 %s10, 2
        // Predicated region
        $region37: #{tpu_custom_call.1} parent=35 // pred_check
          %p481 = pneg %p81
        $region38: #{tpu_custom_call.1} parent=35 // pred_check_branch
          %483 = sbr.rel (%p481) target = $region40
        $region39: #{tpu_custom_call.1} parent=35 // pred_region
          %s484 = smul.u32 4, %s22
          %p485 = scmp.lt.s32.totalorder %s21, 1
          %s486 = scalar_select %p485, %s21, 1
          %p487 = scmp.lt.s32.totalorder %s484, 3
          %s488 = scalar_select %p487, %s484, 3
          %s489 = smul.addr %s488, 3
          %s490 = smul.addr %s486, 12
          %s491 = sadd.s32 %s489, %s490
          %s492 = smul.addr %s491, 8
          %s493 = scalar_lea.vmem %s1, %s492
        $region40: #{tpu_custom_call.1} parent=35 // pred_fallthru
          _
      $region36: #{tpu_custom_call.1} parent=5 // pred_fallthru
        _
    $region6: #{tpu_custom_call.1} parent=1 // loop_footer
      %s14 = sadd.s32 1, %s10
    $region7: #{tpu_custom_call.1} parent=1 // loop_footer_branch
      %9 = sbr.rel target = $region3
    $region8: #{tpu_custom_call.1} parent=1 // loop_exit
      _
    %494 = vsyncpa [#allocation3], 1
    %s495 = scalar_lea.sflag [#allocation3], 1
    %496 = vsyncpa %s495, 1

</llo_original>
